<compile_context>
chip_gen: v7x
topology: tpu7x:2x2x1
jax: 0.10.0
libtpu: 0.0.40
codegen_flags: <defaults>
</compile_context>

<pallas_src>
import jax
import jax.numpy as jnp
from jax.experimental import pallas as pl
from jax.experimental.pallas import tpu as pltpu


def idsc_pallas(x_nhwc, w_pw, b_pw, w_dw, b_dw):
    """x_nhwc: (N, H, W, C_in) f32.
    w_pw: (C_in, C_out), b_pw: (1, C_out), w_dw: (9, C_out), b_dw: (1, C_out).
    Returns (N, H, W, C_out) f32."""
    N, H, W, C_in = x_nhwc.shape
    C_out = w_pw.shape[1]
    R = N * H              # rows (sublane axis)
    Lin = W * C_in         # input lanes
    Lout = W * C_out       # output lanes (128 for the test shape -> unmasked vst)

    # ---- host-side lane-dense repacks (tiny; jitted together with the kernel) ----
    x2d = x_nhwc.reshape(R, Lin)
    eye_w = jnp.eye(W, dtype=w_pw.dtype)
    # Block-diagonal expanded pointwise weight: W copies of (C_in, C_out) on the
    # diagonal, so (N*H, W*C_in) @ (W*C_in, W*C_out) yields the pointwise output
    # already in the lane-dense (row, w*C_out + o) layout.
    # TODO(synk): for production W, keep the expanded weight at one 128-lane tile and
    # add a W-tile grid axis (this form grows O(W^2)).
    w_pw_exp = jnp.einsum("uv,co->ucvo", eye_w, w_pw).reshape(Lin, Lout)

    b_pw_t = jnp.tile(b_pw.reshape(1, C_out), (1, W))              # (1, Lout)
    w_dw_t = jnp.tile(w_dw.reshape(9, C_out), (1, W))              # (9, Lout)
    b_dw_t = jnp.tile(b_dw.reshape(1, C_out), (1, W))              # (1, Lout)

    # Fold the W-border masks into the depthwise weights: kw=0 taps (rows 0,3,6)
    # are invalid at output lanes [0, C_out); kw=2 taps (rows 2,5,8) are invalid
    # at lanes [Lout-C_out, Lout). Zeroing the weights there also neutralizes the
    # lane-roll wrap-around in the kernel.
    lane = jnp.arange(Lout)[None, :]
    row_kw = (jnp.arange(9) % 3)[:, None]
    keep = jnp.where(row_kw == 0, lane >= C_out,
                     jnp.where(row_kw == 2, lane < Lout - C_out, True))
    w_dw_t = jnp.where(keep, w_dw_t, 0.0)

    # Single parameter slab: row 0 = pw bias, rows 1..9 = dw weights, row 10 = dw bias.
    params = jnp.concatenate([b_pw_t, w_dw_t, b_dw_t], axis=0)     # (11, Lout)

    def kernel(x_ref, w_pw_ref, params_ref, o_ref):
        prm = params_ref[...]                                      # (11, Lout)
        b_pw_r = prm[0:1, :]
        wdw = prm[1:10, :]                                         # w-border zeros baked in
        b_dw_r = prm[10:11, :]

        # --- pointwise 1x1 conv: one MXU matmul for the whole batch ----------
        pw = jnp.dot(x_ref[...], w_pw_ref[...],
                     preferred_element_type=jnp.float32) + b_pw_r  # (R, Lout)

        # --- H-border validity from a cheap (R, 1) column iota ---------------
        h_idx = jax.lax.broadcasted_iota(jnp.int32, (R, 1), 0) % H
        h_has_up = h_idx >= 1            # reading h-1 is in-bounds
        h_has_dn = h_idx <= H - 2        # reading h+1 is in-bounds

        # --- depthwise 3x3 (pad=1): center tap + bias fused into acc init ----
        acc = b_dw_r + pw * wdw[4:5, :]                            # (R, Lout) f32

        for kh in range(3):
            dh = kh - 1
            if dh == 0:
                rows = pw
            else:
                # out[r] = pw[r + dh]  ==  sublane roll by -dh; wrapped rows (and any
                # cross-batch-element contamination) are killed by the h mask below.
                rows = pltpu.roll(pw, shift=(-dh) % R, axis=0)
                rows = jnp.where(h_has_up if dh == -1 else h_has_dn, rows, 0.0)
            for kw in range(3):
                if kh == 1 and kw == 1:
                    continue             # center tap already in acc init
                dk = kw - 1
                # out[lane] = rows[lane + dk*C_out]  ==  lane roll by -dk*C_out;
                # wrap-around lanes are multiplied by the zeroed weight lanes.
                tap = rows if dk == 0 else pltpu.roll(
                    rows, shift=(-dk * C_out) % Lout, axis=1)
                acc = acc + tap * wdw[kh * 3 + kw: kh * 3 + kw + 1, :]

        # Lane-dense store (last dim = W*C_out = 128 here -> unmasked vst).
        o_ref[...] = acc.astype(o_ref.dtype)

    grid_spec = pltpu.PrefetchScalarGridSpec(
        num_scalar_prefetch=0,
        grid=(1,),          # whole (tiny) batch in one step: no per-step overhead
        in_specs=[
            pl.BlockSpec((R, Lin), lambda i: (0, 0)),
            pl.BlockSpec((Lin, Lout), lambda i: (0, 0)),
            pl.BlockSpec((11, Lout), lambda i: (0, 0)),
        ],
        out_specs=pl.BlockSpec((R, Lout), lambda i: (0, 0)),
    )

    out2d = pl.pallas_call(
        kernel,
        out_shape=jax.ShapeDtypeStruct((R, Lout), jnp.float32),
        grid_spec=grid_spec,
        compiler_params=pltpu.CompilerParams(
            dimension_semantics=("arbitrary",)),
    )(x2d, w_pw_exp, params)

    # TODO(synk): for production N*H, tile the row axis (multiple of 8/16 rows), mark
    # it "parallel" (v7x 2 TCs), set vmem_limit_bytes for the 64 MiB v7x budget, and
    # consider bf16 activations on v5e/v6e (op is HBM-bound there at scale).
    return out2d.reshape(N, H, W, C_out)


def idsc_reference(x_nhwc, w_pw, b_pw, w_dw, b_dw):
    """Plain-JAX reference with identical semantics (for verification)."""
    pw = jnp.einsum("nhwc,co->nhwo", x_nhwc, w_pw) + b_pw[0]
    padded = jnp.pad(pw, ((0, 0), (1, 1), (1, 1), (0, 0)))
    N, H, W, C = pw.shape
    out = jnp.zeros_like(pw)
    for kh in range(3):
        for kw in range(3):
            out = out + padded[:, kh:kh + H, kw:kw + W, :] * \
                w_dw[kh * 3 + kw][None, None, None, :]
    return out + b_dw[0][None, None, None, :]


if __name__ == "__main__":
    key = jax.random.PRNGKey(0)
    k_x, k_wpw, k_bpw, k_wdw, k_bdw = jax.random.split(key, 5)

    N, C_in, C_out, H, W = 2, 4, 8, 16, 16

    # NCHW input (PyTorch convention) -> NHWC for the kernel.
    x_nchw = jax.random.normal(k_x, (N, C_in, H, W), dtype=jnp.float32)
    x_nhwc = jnp.transpose(x_nchw, (0, 2, 3, 1))

    # Parameter shapes match nn.Conv2d:
    #   pw.weight: (c_out, c_in, 1, 1), pw.bias: (c_out,)
    #   dw.weight: (c_out, 1, 3, 3),    dw.bias: (c_out,)
    w_pw_t = jax.random.normal(k_wpw, (C_out, C_in, 1, 1), dtype=jnp.float32) * 0.1
    b_pw_t = jax.random.normal(k_bpw, (C_out,), dtype=jnp.float32) * 0.1
    w_dw_t = jax.random.normal(k_wdw, (C_out, 1, 3, 3), dtype=jnp.float32) * 0.1
    b_dw_t = jax.random.normal(k_bdw, (C_out,), dtype=jnp.float32) * 0.1

    # Repack for the kernel:
    w_pw = jnp.transpose(w_pw_t[:, :, 0, 0], (1, 0))                  # (C_in, C_out)
    b_pw = b_pw_t.reshape(1, C_out)                                   # (1, C_out)
    w_dw = jnp.transpose(w_dw_t[:, 0].reshape(C_out, 9), (1, 0))      # (9, C_out)
    b_dw = b_dw_t.reshape(1, C_out)                                   # (1, C_out)

    # Jit the full wrapper so the NCHW->NHWC transpose and weight repacks fuse with
    # the kernel launch instead of paying separate HBM round-trips.
    idsc_jit = jax.jit(idsc_pallas)

    out = idsc_jit(x_nhwc, w_pw, b_pw, w_dw, b_dw)
    out = jax.block_until_ready(out)

    ref = idsc_reference(x_nhwc, w_pw, b_pw, w_dw, b_dw)
    assert out.shape == (N, H, W, C_out)
    assert jnp.allclose(out, ref, atol=1e-4, rtol=1e-4), "mismatch vs reference"

    print("KERNEL_OK")
</pallas_src>

<mosaic_0001>
module attributes {stable_mosaic.version = 11 : i64} {
  func.func @kernel(%arg0: i32, %arg1: memref<32x64xf32, #tpu.memory_space<vmem>>, %arg2: memref<64x128xf32, #tpu.memory_space<vmem>>, %arg3: memref<11x128xf32, #tpu.memory_space<vmem>>, %arg4: memref<32x128xf32, #tpu.memory_space<vmem>>) attributes {dimension_semantics = [#tpu.dimension_semantics<arbitrary>], iteration_bounds = array<i64: 1>, scalar_prefetch = 0 : i64, scratch_operands = 0 : i64, tpu.core_type = #tpu.core_type<tc>, window_params = [{pipeline_mode = #tpu.pipeline_mode<synchronous>, transform_indices = @transform_0, window_bounds = array<i64: 32, 64>}, {pipeline_mode = #tpu.pipeline_mode<synchronous>, transform_indices = @transform_1, window_bounds = array<i64: 64, 128>}, {pipeline_mode = #tpu.pipeline_mode<synchronous>, transform_indices = @transform_2, window_bounds = array<i64: 11, 128>}, {pipeline_mode = #tpu.pipeline_mode<synchronous>, transform_indices = @transform_3, window_bounds = array<i64: 32, 128>}]} {
    %c0 = arith.constant 0 : index
    %c0_0 = arith.constant 0 : index
    %0 = vector.load %arg3[%c0, %c0_0] : memref<11x128xf32, #tpu.memory_space<vmem>>, vector<11x128xf32>
    %1 = vector.extract_strided_slice %0 {offsets = [0, 0], sizes = [1, 128], strides = [1, 1]} : vector<11x128xf32> to vector<1x128xf32>
    %2 = vector.extract_strided_slice %0 {offsets = [1, 0], sizes = [9, 128], strides = [1, 1]} : vector<11x128xf32> to vector<9x128xf32>
    %3 = vector.extract_strided_slice %0 {offsets = [10, 0], sizes = [1, 128], strides = [1, 1]} : vector<11x128xf32> to vector<1x128xf32>
    %c0_1 = arith.constant 0 : index
    %c0_2 = arith.constant 0 : index
    %4 = vector.load %arg1[%c0_1, %c0_2] : memref<32x64xf32, #tpu.memory_space<vmem>>, vector<32x64xf32>
    %c0_3 = arith.constant 0 : index
    %c0_4 = arith.constant 0 : index
    %5 = vector.load %arg2[%c0_3, %c0_4] : memref<64x128xf32, #tpu.memory_space<vmem>>, vector<64x128xf32>
    %cst = arith.constant dense<0.000000e+00> : vector<32x128xf32>
    %6 = tpu.matmul %4, %5, %cst {dimension_numbers = #tpu.dot_dimension_numbers<[1], [0], [0], [1], [0, 0, 1, 1], [], []>} : vector<32x64xf32>, vector<64x128xf32>, vector<32x128xf32> -> vector<32x128xf32>
    %7 = vector.broadcast %1 : vector<1x128xf32> to vector<32x128xf32>
    %8 = arith.addf %6, %7 : vector<32x128xf32>
    %9 = tpu.iota {dimensions = array<i32: 0>} : vector<32x1xi32>
    %c16_i32 = arith.constant 16 : i32
    %c0_i32 = arith.constant 0 : i32
    %10 = arith.cmpi eq, %c16_i32, %c0_i32 : i32
    %c1_i32 = arith.constant 1 : i32
    %11 = arith.select %10, %c1_i32, %c16_i32 : i32
    %12 = vector.broadcast %11 : i32 to vector<32x1xi32>
    %13 = arith.remsi %9, %12 : vector<32x1xi32>
    %c0_i32_5 = arith.constant 0 : i32
    %14 = vector.broadcast %c0_i32_5 : i32 to vector<32x1xi32>
    %15 = arith.cmpi ne, %13, %14 : vector<32x1xi32>
    %c0_i32_6 = arith.constant 0 : i32
    %16 = vector.broadcast %c0_i32_6 : i32 to vector<32x1xi32>
    %17 = arith.cmpi slt, %13, %16 : vector<32x1xi32>
    %c0_i32_7 = arith.constant 0 : i32
    %18 = arith.cmpi slt, %11, %c0_i32_7 : i32
    %19 = vector.broadcast %18 : i1 to vector<32x1xi1>
    %20 = vector.broadcast %19 : vector<32x1xi1> to vector<32x1xi1>
    %21 = arith.xori %17, %20 : vector<32x1xi1>
    %22 = arith.andi %21, %15 : vector<32x1xi1>
    %23 = vector.broadcast %11 : i32 to vector<32x1xi32>
    %24 = arith.addi %13, %23 : vector<32x1xi32>
    %25 = arith.select %22, %24, %13 : vector<32x1xi1>, vector<32x1xi32>
    %c1_i32_8 = arith.constant 1 : i32
    %26 = vector.broadcast %c1_i32_8 : i32 to vector<32x1xi32>
    %27 = arith.cmpi sge, %25, %26 : vector<32x1xi32>
    %c14_i32 = arith.constant 14 : i32
    %28 = vector.broadcast %c14_i32 : i32 to vector<32x1xi32>
    %29 = arith.cmpi sle, %25, %28 : vector<32x1xi32>
    %30 = vector.extract_strided_slice %2 {offsets = [4, 0], sizes = [1, 128], strides = [1, 1]} : vector<9x128xf32> to vector<1x128xf32>
    %31 = vector.broadcast %30 : vector<1x128xf32> to vector<32x128xf32>
    %32 = arith.mulf %8, %31 : vector<32x128xf32>
    %33 = vector.broadcast %3 : vector<1x128xf32> to vector<32x128xf32>
    %34 = arith.addf %33, %32 : vector<32x128xf32>
    %c1_i32_9 = arith.constant 1 : i32
    %35 = tpu.dynamic_rotate %8 by %c1_i32_9 dim 0 : vector<32x128xf32>, i32 -> vector<32x128xf32>
    %cst_10 = arith.constant 0.000000e+00 : f32
    %36 = vector.shape_cast %27 : vector<32x1xi1> to vector<32x1xi1>
    %37 = vector.broadcast %36 : vector<32x1xi1> to vector<32x128xi1>
    %38 = vector.broadcast %cst_10 : f32 to vector<32x128xf32>
    %39 = arith.select %37, %35, %38 : vector<32x128xi1>, vector<32x128xf32>
    %c8_i32 = arith.constant 8 : i32
    %40 = tpu.dynamic_rotate %39 by %c8_i32 dim 1 : vector<32x128xf32>, i32 -> vector<32x128xf32>
    %41 = vector.extract_strided_slice %2 {offsets = [0, 0], sizes = [1, 128], strides = [1, 1]} : vector<9x128xf32> to vector<1x128xf32>
    %42 = vector.broadcast %41 : vector<1x128xf32> to vector<32x128xf32>
    %43 = arith.mulf %40, %42 : vector<32x128xf32>
    %44 = arith.addf %34, %43 : vector<32x128xf32>
    %45 = vector.extract_strided_slice %2 {offsets = [1, 0], sizes = [1, 128], strides = [1, 1]} : vector<9x128xf32> to vector<1x128xf32>
    %46 = vector.broadcast %45 : vector<1x128xf32> to vector<32x128xf32>
    %47 = arith.mulf %39, %46 : vector<32x128xf32>
    %48 = arith.addf %44, %47 : vector<32x128xf32>
    %c120_i32 = arith.constant 120 : i32
    %49 = tpu.dynamic_rotate %39 by %c120_i32 dim 1 : vector<32x128xf32>, i32 -> vector<32x128xf32>
    %50 = vector.extract_strided_slice %2 {offsets = [2, 0], sizes = [1, 128], strides = [1, 1]} : vector<9x128xf32> to vector<1x128xf32>
    %51 = vector.broadcast %50 : vector<1x128xf32> to vector<32x128xf32>
    %52 = arith.mulf %49, %51 : vector<32x128xf32>
    %53 = arith.addf %48, %52 : vector<32x128xf32>
    %c8_i32_11 = arith.constant 8 : i32
    %54 = tpu.dynamic_rotate %8 by %c8_i32_11 dim 1 : vector<32x128xf32>, i32 -> vector<32x128xf32>
    %55 = vector.extract_strided_slice %2 {offsets = [3, 0], sizes = [1, 128], strides = [1, 1]} : vector<9x128xf32> to vector<1x128xf32>
    %56 = vector.broadcast %55 : vector<1x128xf32> to vector<32x128xf32>
    %57 = arith.mulf %54, %56 : vector<32x128xf32>
    %58 = arith.addf %53, %57 : vector<32x128xf32>
    %c120_i32_12 = arith.constant 120 : i32
    %59 = tpu.dynamic_rotate %8 by %c120_i32_12 dim 1 : vector<32x128xf32>, i32 -> vector<32x128xf32>
    %60 = vector.extract_strided_slice %2 {offsets = [5, 0], sizes = [1, 128], strides = [1, 1]} : vector<9x128xf32> to vector<1x128xf32>
    %61 = vector.broadcast %60 : vector<1x128xf32> to vector<32x128xf32>
    %62 = arith.mulf %59, %61 : vector<32x128xf32>
    %63 = arith.addf %58, %62 : vector<32x128xf32>
    %c31_i32 = arith.constant 31 : i32
    %64 = tpu.dynamic_rotate %8 by %c31_i32 dim 0 : vector<32x128xf32>, i32 -> vector<32x128xf32>
    %cst_13 = arith.constant 0.000000e+00 : f32
    %65 = vector.shape_cast %29 : vector<32x1xi1> to vector<32x1xi1>
    %66 = vector.broadcast %65 : vector<32x1xi1> to vector<32x128xi1>
    %67 = vector.broadcast %cst_13 : f32 to vector<32x128xf32>
    %68 = arith.select %66, %64, %67 : vector<32x128xi1>, vector<32x128xf32>
    %c8_i32_14 = arith.constant 8 : i32
    %69 = tpu.dynamic_rotate %68 by %c8_i32_14 dim 1 : vector<32x128xf32>, i32 -> vector<32x128xf32>
    %70 = vector.extract_strided_slice %2 {offsets = [6, 0], sizes = [1, 128], strides = [1, 1]} : vector<9x128xf32> to vector<1x128xf32>
    %71 = vector.broadcast %70 : vector<1x128xf32> to vector<32x128xf32>
    %72 = arith.mulf %69, %71 : vector<32x128xf32>
    %73 = arith.addf %63, %72 : vector<32x128xf32>
    %74 = vector.extract_strided_slice %2 {offsets = [7, 0], sizes = [1, 128], strides = [1, 1]} : vector<9x128xf32> to vector<1x128xf32>
    %75 = vector.broadcast %74 : vector<1x128xf32> to vector<32x128xf32>
    %76 = arith.mulf %68, %75 : vector<32x128xf32>
    %77 = arith.addf %73, %76 : vector<32x128xf32>
    %c120_i32_15 = arith.constant 120 : i32
    %78 = tpu.dynamic_rotate %68 by %c120_i32_15 dim 1 : vector<32x128xf32>, i32 -> vector<32x128xf32>
    %79 = vector.extract_strided_slice %2 {offsets = [8, 0], sizes = [1, 128], strides = [1, 1]} : vector<9x128xf32> to vector<1x128xf32>
    %80 = vector.broadcast %79 : vector<1x128xf32> to vector<32x128xf32>
    %81 = arith.mulf %78, %80 : vector<32x128xf32>
    %82 = arith.addf %77, %81 : vector<32x128xf32>
    %c0_16 = arith.constant 0 : index
    %c0_17 = arith.constant 0 : index
    %83 = vector.load %arg4[%c0_16, %c0_17] : memref<32x128xf32, #tpu.memory_space<vmem>>, vector<32x128xf32>
    tpu.vector_store %arg4[%c0_16, %c0_17], %82 {strides = array<i32>} : memref<32x128xf32, #tpu.memory_space<vmem>>, vector<32x128xf32>,
    return
  }
  func.func @transform_0(%arg0: i32) -> (i32, i32) {
    %c0_i32 = arith.constant 0 : i32
    %c0_i32_0 = arith.constant 0 : i32
    %c0_i32_1 = arith.constant 0 : i32
    return %c0_i32, %c0_i32_0 : i32, i32
  }
  func.func @transform_1(%arg0: i32) -> (i32, i32) {
    %c0_i32 = arith.constant 0 : i32
    %c0_i32_0 = arith.constant 0 : i32
    %c0_i32_1 = arith.constant 0 : i32
    return %c0_i32, %c0_i32_0 : i32, i32
  }
  func.func @transform_2(%arg0: i32) -> (i32, i32) {
    %c0_i32 = arith.constant 0 : i32
    %c0_i32_0 = arith.constant 0 : i32
    %c0_i32_1 = arith.constant 0 : i32
    return %c0_i32, %c0_i32_0 : i32, i32
  }
  func.func @transform_3(%arg0: i32) -> (i32, i32) {
    %c0_i32 = arith.constant 0 : i32
    %c0_i32_0 = arith.constant 0 : i32
    %c0_i32_1 = arith.constant 0 : i32
    return %c0_i32, %c0_i32_0 : i32, i32
  }
}

</mosaic_0001>

<llo_original>
// kernel: tile.24
$region0: #{tile.24}
  %s0 = inlined_call_operand.vmem [shape: f32[9,16,8], index: 0, kind: input, shape index: {}]
  %s1 = inlined_call_operand.vmem [shape: f32[9,128], index: 1, kind: output, shape index: {}]
  %s2 = smov 3
  %v3 = vld [vmem:[%s0] ss:$16 sm:%s2]
  %s4 = smov 12
  %v5 = vld [vmem:[%s0] ss:$16 sm:%s4]
  %vm6 = vcmask 1043458
  %v7 = vsel %vm6, %v5, %v3
  %s8 = smov 48
  %v9 = vld [vmem:[%s0] ss:$16 sm:%s8]
  %vm10 = vcmask 1045508
  %v11 = vsel %vm10, %v9, %v7
  %s12 = smov 192
  %v13 = vld [vmem:[%s0] ss:$16 sm:%s12]
  %vm14 = vcmask 1047558
  %v15 = vsel %vm14, %v13, %v11
  %vm16 = vcmask 64512
  %17 = vst.msk [vmem:[%s1] sm:$0xff] %vm16, %v15
  %s18 = scalar_lea.vmem %s0, 128
  %v19 = vld [vmem:[%s18] sm:$0x1]
  %vm20 = vcmask 64512
  %s21 = scalar_lea.vmem %s1, 8
  %22 = vst.msk [vmem:[%s21] sm:$0x1] %vm20, %v19
  %s23 = scalar_lea.vmem %s0, 15
  %s24 = smov 3
  %v25 = vld [vmem:[%s23] ss:$16 sm:%s24]
  %s26 = scalar_lea.vmem %s0, 15
  %s27 = smov 12
  %v28 = vld [vmem:[%s26] ss:$16 sm:%s27]
  %vm29 = vcmask 1043458
  %v30 = vsel %vm29, %v28, %v25
  %s31 = scalar_lea.vmem %s0, 15
  %s32 = smov 48
  %v33 = vld [vmem:[%s31] ss:$16 sm:%s32]
  %vm34 = vcmask 1045508
  %v35 = vsel %vm34, %v33, %v30
  %s36 = scalar_lea.vmem %s0, 15
  %s37 = smov 192
  %v38 = vld [vmem:[%s36] ss:$16 sm:%s37]
  %vm39 = vcmask 1047558
  %v40 = vsel %vm39, %v38, %v35
  %41 = vrot.lane.b32.xlu0 %v40, 120
  %v42 = vpop.permute.xlu0 %41
  %vm43 = vcmask 1048512
  %44 = vst.msk [vmem:[%s1] sm:$0xff] %vm43, %v42
  %s45 = scalar_lea.vmem %s0, 143
  %v46 = vld [vmem:[%s45] sm:$0x1]
  %47 = vrot.lane.b32.xlu0 %v46, 120
  %v48 = vpop.permute.xlu0 %47
  %vm49 = vcmask 1048512
  %s50 = scalar_lea.vmem %s1, 8
  %51 = vst.msk [vmem:[%s50] sm:$0x1] %vm49, %v48
  %s52 = scalar_lea.vmem %s0, 14
  %s53 = smov 3
  %v54 = vld [vmem:[%s52] ss:$16 sm:%s53]
  %s55 = scalar_lea.vmem %s0, 14
  %s56 = smov 12
  %v57 = vld [vmem:[%s55] ss:$16 sm:%s56]
  %vm58 = vcmask 1043458
  %v59 = vsel %vm58, %v57, %v54
  %s60 = scalar_lea.vmem %s0, 14
  %s61 = smov 48
  %v62 = vld [vmem:[%s60] ss:$16 sm:%s61]
  %vm63 = vcmask 1045508
  %v64 = vsel %vm63, %v62, %v59
  %s65 = scalar_lea.vmem %s0, 14
  %s66 = smov 192
  %v67 = vld [vmem:[%s65] ss:$16 sm:%s66]
  %vm68 = vcmask 1047558
  %v69 = vsel %vm68, %v67, %v64
  %70 = vrot.lane.b32.xlu0 %v69, 112
  %v71 = vpop.permute.xlu0 %70
  %vm72 = vcmask 982912
  %73 = vst.msk [vmem:[%s1] sm:$0xff] %vm72, %v71
  %s74 = scalar_lea.vmem %s0, 142
  %v75 = vld [vmem:[%s74] sm:$0x1]
  %76 = vrot.lane.b32.xlu0 %v75, 112
  %v77 = vpop.permute.xlu0 %76
  %vm78 = vcmask 982912
  %s79 = scalar_lea.vmem %s1, 8
  %80 = vst.msk [vmem:[%s79] sm:$0x1] %vm78, %v77
  %s81 = scalar_lea.vmem %s0, 13
  %s82 = smov 3
  %v83 = vld [vmem:[%s81] ss:$16 sm:%s82]
  %s84 = scalar_lea.vmem %s0, 13
  %s85 = smov 12
  %v86 = vld [vmem:[%s84] ss:$16 sm:%s85]
  %vm87 = vcmask 1043458
  %v88 = vsel %vm87, %v86, %v83
  %s89 = scalar_lea.vmem %s0, 13
  %s90 = smov 48
  %v91 = vld [vmem:[%s89] ss:$16 sm:%s90]
  %vm92 = vcmask 1045508
  %v93 = vsel %vm92, %v91, %v88
  %s94 = scalar_lea.vmem %s0, 13
  %s95 = smov 192
  %v96 = vld [vmem:[%s94] ss:$16 sm:%s95]
  %vm97 = vcmask 1047558
  %v98 = vsel %vm97, %v96, %v93
  %99 = vrot.lane.b32.xlu0 %v98, 104
  %v100 = vpop.permute.xlu0 %99
  %vm101 = vcmask 917312
  %102 = vst.msk [vmem:[%s1] sm:$0xff] %vm101, %v100
  %s103 = scalar_lea.vmem %s0, 141
  %v104 = vld [vmem:[%s103] sm:$0x1]
  %105 = vrot.lane.b32.xlu0 %v104, 104
  %v106 = vpop.permute.xlu0 %105
  %vm107 = vcmask 917312
  %s108 = scalar_lea.vmem %s1, 8
  %109 = vst.msk [vmem:[%s108] sm:$0x1] %vm107, %v106
  %s110 = scalar_lea.vmem %s0, 12
  %s111 = smov 3
  %v112 = vld [vmem:[%s110] ss:$16 sm:%s111]
  %s113 = scalar_lea.vmem %s0, 12
  %s114 = smov 12
  %v115 = vld [vmem:[%s113] ss:$16 sm:%s114]
  %vm116 = vcmask 1043458
  %v117 = vsel %vm116, %v115, %v112
  %s118 = scalar_lea.vmem %s0, 12
  %s119 = smov 48
  %v120 = vld [vmem:[%s118] ss:$16 sm:%s119]
  %vm121 = vcmask 1045508
  %v122 = vsel %vm121, %v120, %v117
  %s123 = scalar_lea.vmem %s0, 12
  %s124 = smov 192
  %v125 = vld [vmem:[%s123] ss:$16 sm:%s124]
  %vm126 = vcmask 1047558
  %v127 = vsel %vm126, %v125, %v122
  %128 = vrot.lane.b32.xlu0 %v127, 96
  %v129 = vpop.permute.xlu0 %128
  %vm130 = vcmask 851712
  %131 = vst.msk [vmem:[%s1] sm:$0xff] %vm130, %v129
  %s132 = scalar_lea.vmem %s0, 140
  %v133 = vld [vmem:[%s132] sm:$0x1]
  %134 = vrot.lane.b32.xlu0 %v133, 96
  %v135 = vpop.permute.xlu0 %134
  %vm136 = vcmask 851712
  %s137 = scalar_lea.vmem %s1, 8
  %138 = vst.msk [vmem:[%s137] sm:$0x1] %vm136, %v135
  %s139 = scalar_lea.vmem %s0, 11
  %s140 = smov 3
  %v141 = vld [vmem:[%s139] ss:$16 sm:%s140]
  %s142 = scalar_lea.vmem %s0, 11
  %s143 = smov 12
  %v144 = vld [vmem:[%s142] ss:$16 sm:%s143]
  %vm145 = vcmask 1043458
  %v146 = vsel %vm145, %v144, %v141
  %s147 = scalar_lea.vmem %s0, 11
  %s148 = smov 48
  %v149 = vld [vmem:[%s147] ss:$16 sm:%s148]
  %vm150 = vcmask 1045508
  %v151 = vsel %vm150, %v149, %v146
  %s152 = scalar_lea.vmem %s0, 11
  %s153 = smov 192
  %v154 = vld [vmem:[%s152] ss:$16 sm:%s153]
  %vm155 = vcmask 1047558
  %v156 = vsel %vm155, %v154, %v151
  %157 = vrot.lane.b32.xlu0 %v156, 88
  %v158 = vpop.permute.xlu0 %157
  %vm159 = vcmask 786112
  %160 = vst.msk [vmem:[%s1] sm:$0xff] %vm159, %v158
  %s161 = scalar_lea.vmem %s0, 139
  %v162 = vld [vmem:[%s161] sm:$0x1]
  %163 = vrot.lane.b32.xlu0 %v162, 88
  %v164 = vpop.permute.xlu0 %163
  %vm165 = vcmask 786112
  %s166 = scalar_lea.vmem %s1, 8
  %167 = vst.msk [vmem:[%s166] sm:$0x1] %vm165, %v164
  %s168 = scalar_lea.vmem %s0, 10
  %s169 = smov 3
  %v170 = vld [vmem:[%s168] ss:$16 sm:%s169]
  %s171 = scalar_lea.vmem %s0, 10
  %s172 = smov 12
  %v173 = vld [vmem:[%s171] ss:$16 sm:%s172]
  %vm174 = vcmask 1043458
  %v175 = vsel %vm174, %v173, %v170
  %s176 = scalar_lea.vmem %s0, 10
  %s177 = smov 48
  %v178 = vld [vmem:[%s176] ss:$16 sm:%s177]
  %vm179 = vcmask 1045508
  %v180 = vsel %vm179, %v178, %v175
  %s181 = scalar_lea.vmem %s0, 10
  %s182 = smov 192
  %v183 = vld [vmem:[%s181] ss:$16 sm:%s182]
  %vm184 = vcmask 1047558
  %v185 = vsel %vm184, %v183, %v180
  %186 = vrot.lane.b32.xlu0 %v185, 80
  %v187 = vpop.permute.xlu0 %186
  %vm188 = vcmask 720512
  %189 = vst.msk [vmem:[%s1] sm:$0xff] %vm188, %v187
  %s190 = scalar_lea.vmem %s0, 138
  %v191 = vld [vmem:[%s190] sm:$0x1]
  %192 = vrot.lane.b32.xlu0 %v191, 80
  %v193 = vpop.permute.xlu0 %192
  %vm194 = vcmask 720512
  %s195 = scalar_lea.vmem %s1, 8
  %196 = vst.msk [vmem:[%s195] sm:$0x1] %vm194, %v193
  %s197 = scalar_lea.vmem %s0, 9
  %s198 = smov 3
  %v199 = vld [vmem:[%s197] ss:$16 sm:%s198]
  %s200 = scalar_lea.vmem %s0, 9
  %s201 = smov 12
  %v202 = vld [vmem:[%s200] ss:$16 sm:%s201]
  %vm203 = vcmask 1043458
  %v204 = vsel %vm203, %v202, %v199
  %s205 = scalar_lea.vmem %s0, 9
  %s206 = smov 48
  %v207 = vld [vmem:[%s205] ss:$16 sm:%s206]
  %vm208 = vcmask 1045508
  %v209 = vsel %vm208, %v207, %v204
  %s210 = scalar_lea.vmem %s0, 9
  %s211 = smov 192
  %v212 = vld [vmem:[%s210] ss:$16 sm:%s211]
  %vm213 = vcmask 1047558
  %v214 = vsel %vm213, %v212, %v209
  %215 = vrot.lane.b32.xlu0 %v214, 72
  %v216 = vpop.permute.xlu0 %215
  %vm217 = vcmask 654912
  %218 = vst.msk [vmem:[%s1] sm:$0xff] %vm217, %v216
  %s219 = scalar_lea.vmem %s0, 137
  %v220 = vld [vmem:[%s219] sm:$0x1]
  %221 = vrot.lane.b32.xlu0 %v220, 72
  %v222 = vpop.permute.xlu0 %221
  %vm223 = vcmask 654912
  %s224 = scalar_lea.vmem %s1, 8
  %225 = vst.msk [vmem:[%s224] sm:$0x1] %vm223, %v222
  %s226 = scalar_lea.vmem %s0, 8
  %s227 = smov 3
  %v228 = vld [vmem:[%s226] ss:$16 sm:%s227]
  %s229 = scalar_lea.vmem %s0, 8
  %s230 = smov 12
  %v231 = vld [vmem:[%s229] ss:$16 sm:%s230]
  %vm232 = vcmask 1043458
  %v233 = vsel %vm232, %v231, %v228
  %s234 = scalar_lea.vmem %s0, 8
  %s235 = smov 48
  %v236 = vld [vmem:[%s234] ss:$16 sm:%s235]
  %vm237 = vcmask 1045508
  %v238 = vsel %vm237, %v236, %v233
  %s239 = scalar_lea.vmem %s0, 8
  %s240 = smov 192
  %v241 = vld [vmem:[%s239] ss:$16 sm:%s240]
  %vm242 = vcmask 1047558
  %v243 = vsel %vm242, %v241, %v238
  %244 = vrot.lane.b32.xlu0 %v243, 64
  %v245 = vpop.permute.xlu0 %244
  %vm246 = vcmask 589312
  %247 = vst.msk [vmem:[%s1] sm:$0xff] %vm246, %v245
  %s248 = scalar_lea.vmem %s0, 136
  %v249 = vld [vmem:[%s248] sm:$0x1]
  %250 = vrot.lane.b32.xlu0 %v249, 64
  %v251 = vpop.permute.xlu0 %250
  %vm252 = vcmask 589312
  %s253 = scalar_lea.vmem %s1, 8
  %254 = vst.msk [vmem:[%s253] sm:$0x1] %vm252, %v251
  %s255 = scalar_lea.vmem %s0, 7
  %s256 = smov 3
  %v257 = vld [vmem:[%s255] ss:$16 sm:%s256]
  %s258 = scalar_lea.vmem %s0, 7
  %s259 = smov 12
  %v260 = vld [vmem:[%s258] ss:$16 sm:%s259]
  %vm261 = vcmask 1043458
  %v262 = vsel %vm261, %v260, %v257
  %s263 = scalar_lea.vmem %s0, 7
  %s264 = smov 48
  %v265 = vld [vmem:[%s263] ss:$16 sm:%s264]
  %vm266 = vcmask 1045508
  %v267 = vsel %vm266, %v265, %v262
  %s268 = scalar_lea.vmem %s0, 7
  %s269 = smov 192
  %v270 = vld [vmem:[%s268] ss:$16 sm:%s269]
  %vm271 = vcmask 1047558
  %v272 = vsel %vm271, %v270, %v267
  %273 = vrot.lane.b32.xlu0 %v272, 56
  %v274 = vpop.permute.xlu0 %273
  %vm275 = vcmask 523712
  %276 = vst.msk [vmem:[%s1] sm:$0xff] %vm275, %v274
  %s277 = scalar_lea.vmem %s0, 135
  %v278 = vld [vmem:[%s277] sm:$0x1]
  %279 = vrot.lane.b32.xlu0 %v278, 56
  %v280 = vpop.permute.xlu0 %279
  %vm281 = vcmask 523712
  %s282 = scalar_lea.vmem %s1, 8
  %283 = vst.msk [vmem:[%s282] sm:$0x1] %vm281, %v280
  %s284 = scalar_lea.vmem %s0, 6
  %s285 = smov 3
  %v286 = vld [vmem:[%s284] ss:$16 sm:%s285]
  %s287 = scalar_lea.vmem %s0, 6
  %s288 = smov 12
  %v289 = vld [vmem:[%s287] ss:$16 sm:%s288]
  %vm290 = vcmask 1043458
  %v291 = vsel %vm290, %v289, %v286
  %s292 = scalar_lea.vmem %s0, 6
  %s293 = smov 48
  %v294 = vld [vmem:[%s292] ss:$16 sm:%s293]
  %vm295 = vcmask 1045508
  %v296 = vsel %vm295, %v294, %v291
  %s297 = scalar_lea.vmem %s0, 6
  %s298 = smov 192
  %v299 = vld [vmem:[%s297] ss:$16 sm:%s298]
  %vm300 = vcmask 1047558
  %v301 = vsel %vm300, %v299, %v296
  %302 = vrot.lane.b32.xlu0 %v301, 48
  %v303 = vpop.permute.xlu0 %302
  %vm304 = vcmask 458112
  %305 = vst.msk [vmem:[%s1] sm:$0xff] %vm304, %v303
  %s306 = scalar_lea.vmem %s0, 134
  %v307 = vld [vmem:[%s306] sm:$0x1]
  %308 = vrot.lane.b32.xlu0 %v307, 48
  %v309 = vpop.permute.xlu0 %308
  %vm310 = vcmask 458112
  %s311 = scalar_lea.vmem %s1, 8
  %312 = vst.msk [vmem:[%s311] sm:$0x1] %vm310, %v309
  %s313 = scalar_lea.vmem %s0, 5
  %s314 = smov 3
  %v315 = vld [vmem:[%s313] ss:$16 sm:%s314]
  %s316 = scalar_lea.vmem %s0, 5
  %s317 = smov 12
  %v318 = vld [vmem:[%s316] ss:$16 sm:%s317]
  %vm319 = vcmask 1043458
  %v320 = vsel %vm319, %v318, %v315
  %s321 = scalar_lea.vmem %s0, 5
  %s322 = smov 48
  %v323 = vld [vmem:[%s321] ss:$16 sm:%s322]
  %vm324 = vcmask 1045508
  %v325 = vsel %vm324, %v323, %v320
  %s326 = scalar_lea.vmem %s0, 5
  %s327 = smov 192
  %v328 = vld [vmem:[%s326] ss:$16 sm:%s327]
  %vm329 = vcmask 1047558
  %v330 = vsel %vm329, %v328, %v325
  %331 = vrot.lane.b32.xlu0 %v330, 40
  %v332 = vpop.permute.xlu0 %331
  %vm333 = vcmask 392512
  %334 = vst.msk [vmem:[%s1] sm:$0xff] %vm333, %v332
  %s335 = scalar_lea.vmem %s0, 133
  %v336 = vld [vmem:[%s335] sm:$0x1]
  %337 = vrot.lane.b32.xlu0 %v336, 40
  %v338 = vpop.permute.xlu0 %337
  %vm339 = vcmask 392512
  %s340 = scalar_lea.vmem %s1, 8
  %341 = vst.msk [vmem:[%s340] sm:$0x1] %vm339, %v338
  %s342 = scalar_lea.vmem %s0, 4
  %s343 = smov 3
  %v344 = vld [vmem:[%s342] ss:$16 sm:%s343]
  %s345 = scalar_lea.vmem %s0, 4
  %s346 = smov 12
  %v347 = vld [vmem:[%s345] ss:$16 sm:%s346]
  %vm348 = vcmask 1043458
  %v349 = vsel %vm348, %v347, %v344
  %s350 = scalar_lea.vmem %s0, 4
  %s351 = smov 48
  %v352 = vld [vmem:[%s350] ss:$16 sm:%s351]
  %vm353 = vcmask 1045508
  %v354 = vsel %vm353, %v352, %v349
  %s355 = scalar_lea.vmem %s0, 4
  %s356 = smov 192
  %v357 = vld [vmem:[%s355] ss:$16 sm:%s356]
  %vm358 = vcmask 1047558
  %v359 = vsel %vm358, %v357, %v354
  %360 = vrot.lane.b32.xlu0 %v359, 32
  %v361 = vpop.permute.xlu0 %360
  %vm362 = vcmask 326912
  %363 = vst.msk [vmem:[%s1] sm:$0xff] %vm362, %v361
  %s364 = scalar_lea.vmem %s0, 132
  %v365 = vld [vmem:[%s364] sm:$0x1]
  %366 = vrot.lane.b32.xlu0 %v365, 32
  %v367 = vpop.permute.xlu0 %366
  %vm368 = vcmask 326912
  %s369 = scalar_lea.vmem %s1, 8
  %370 = vst.msk [vmem:[%s369] sm:$0x1] %vm368, %v367
  %s371 = scalar_lea.vmem %s0, 3
  %s372 = smov 3
  %v373 = vld [vmem:[%s371] ss:$16 sm:%s372]
  %s374 = scalar_lea.vmem %s0, 3
  %s375 = smov 12
  %v376 = vld [vmem:[%s374] ss:$16 sm:%s375]
  %vm377 = vcmask 1043458
  %v378 = vsel %vm377, %v376, %v373
  %s379 = scalar_lea.vmem %s0, 3
  %s380 = smov 48
  %v381 = vld [vmem:[%s379] ss:$16 sm:%s380]
  %vm382 = vcmask 1045508
  %v383 = vsel %vm382, %v381, %v378
  %s384 = scalar_lea.vmem %s0, 3
  %s385 = smov 192
  %v386 = vld [vmem:[%s384] ss:$16 sm:%s385]
  %vm387 = vcmask 1047558
  %v388 = vsel %vm387, %v386, %v383
  %389 = vrot.lane.b32.xlu0 %v388, 24
  %v390 = vpop.permute.xlu0 %389
  %vm391 = vcmask 261312
  %392 = vst.msk [vmem:[%s1] sm:$0xff] %vm391, %v390
  %s393 = scalar_lea.vmem %s0, 131
  %v394 = vld [vmem:[%s393] sm:$0x1]
  %395 = vrot.lane.b32.xlu0 %v394, 24
  %v396 = vpop.permute.xlu0 %395
  %vm397 = vcmask 261312
  %s398 = scalar_lea.vmem %s1, 8
  %399 = vst.msk [vmem:[%s398] sm:$0x1] %vm397, %v396
  %s400 = scalar_lea.vmem %s0, 2
  %s401 = smov 3
  %v402 = vld [vmem:[%s400] ss:$16 sm:%s401]
  %s403 = scalar_lea.vmem %s0, 2
  %s404 = smov 12
  %v405 = vld [vmem:[%s403] ss:$16 sm:%s404]
  %vm406 = vcmask 1043458
  %v407 = vsel %vm406, %v405, %v402
  %s408 = scalar_lea.vmem %s0, 2
  %s409 = smov 48
  %v410 = vld [vmem:[%s408] ss:$16 sm:%s409]
  %vm411 = vcmask 1045508
  %v412 = vsel %vm411, %v410, %v407
  %s413 = scalar_lea.vmem %s0, 2
  %s414 = smov 192
  %v415 = vld [vmem:[%s413] ss:$16 sm:%s414]
  %vm416 = vcmask 1047558
  %v417 = vsel %vm416, %v415, %v412
  %418 = vrot.lane.b32.xlu0 %v417, 16
  %v419 = vpop.permute.xlu0 %418
  %vm420 = vcmask 195712
  %421 = vst.msk [vmem:[%s1] sm:$0xff] %vm420, %v419
  %s422 = scalar_lea.vmem %s0, 130
  %v423 = vld [vmem:[%s422] sm:$0x1]
  %424 = vrot.lane.b32.xlu0 %v423, 16
  %v425 = vpop.permute.xlu0 %424
  %vm426 = vcmask 195712
  %s427 = scalar_lea.vmem %s1, 8
  %428 = vst.msk [vmem:[%s427] sm:$0x1] %vm426, %v425
  %s429 = scalar_lea.vmem %s0, 1
  %s430 = smov 3
  %v431 = vld [vmem:[%s429] ss:$16 sm:%s430]
  %s432 = scalar_lea.vmem %s0, 1
  %s433 = smov 12
  %v434 = vld [vmem:[%s432] ss:$16 sm:%s433]
  %vm435 = vcmask 1043458
  %v436 = vsel %vm435, %v434, %v431
  %s437 = scalar_lea.vmem %s0, 1
  %s438 = smov 48
  %v439 = vld [vmem:[%s437] ss:$16 sm:%s438]
  %vm440 = vcmask 1045508
  %v441 = vsel %vm440, %v439, %v436
  %s442 = scalar_lea.vmem %s0, 1
  %s443 = smov 192
  %v444 = vld [vmem:[%s442] ss:$16 sm:%s443]
  %vm445 = vcmask 1047558
  %v446 = vsel %vm445, %v444, %v441
  %447 = vrot.lane.b32.xlu0 %v446, 8
  %v448 = vpop.permute.xlu0 %447
  %vm449 = vcmask 130112
  %450 = vst.msk [vmem:[%s1] sm:$0xff] %vm449, %v448
  %s451 = scalar_lea.vmem %s0, 129
  %v452 = vld [vmem:[%s451] sm:$0x1]
  %453 = vrot.lane.b32.xlu0 %v452, 8
  %v454 = vpop.permute.xlu0 %453
  %vm455 = vcmask 130112
  %s456 = scalar_lea.vmem %s1, 8
  %457 = vst.msk [vmem:[%s456] sm:$0x1] %vm455, %v454

// kernel: idsc_pallas.1
$region0: #{idsc_pallas.1}
  #allocation0 [shape = 'u32[]', space=smem, size = 0x4, offset = 0x4, fixed_abs, tag = 'smem constant byte address 0x4 - core index']
  #allocation1 [shape = 'u32[144,128]{1,0:T(1,128)}', space=vmem, size = 0x12000, scoped, tag = 'internal scratch']
  %s0 = inlined_call_operand.vmem [shape: f32[32,64], index: 0, kind: input, shape index: {}]
  %s1 = inlined_call_operand.vmem [shape: f32[64,128], index: 1, kind: input, shape index: {}]
  %s2 = inlined_call_operand.vmem [shape: f32[11,128], index: 2, kind: input, shape index: {}]
  %s3 = inlined_call_operand.vmem [shape: f32[32,128], index: 3, kind: output, shape index: {}]
  %s4 = sld [smem:[#allocation0]]
  $region22: #{idsc_pallas.1} parent=0
    _
  %s6 = ssub.s32 1, %s4
  %s7 = scalar_select 0, %s6, %s4
  // Predicated region
  $region2: #{idsc_pallas.1} parent=0 // pred_check
    _
  $region3: #{idsc_pallas.1} parent=0 // pred_check_branch
    %9 = sbr.rel (0) target = $region5
  $region4: #{idsc_pallas.1} parent=0 // pred_region
    _
  $region5: #{idsc_pallas.1} parent=0 // pred_fallthru
    _
  // Predicated region
  $region6: #{idsc_pallas.1} parent=0 // pred_check
    _
  $region7: #{idsc_pallas.1} parent=0 // pred_check_branch
    %11 = sbr.rel (0) target = $region9
  $region8: #{idsc_pallas.1} parent=0 // pred_region
    _
  $region9: #{idsc_pallas.1} parent=0 // pred_fallthru
    _
  // Predicated region
  $region10: #{idsc_pallas.1} parent=0 // pred_check
    _
  $region11: #{idsc_pallas.1} parent=0 // pred_check_branch
    %13 = sbr.rel (0) target = $region13
  $region12: #{idsc_pallas.1} parent=0 // pred_region
    _
  $region13: #{idsc_pallas.1} parent=0 // pred_fallthru
    _
  %v14 = vld [vmem:[%s2] sm:$0xff]
  %v15 = vld [vmem:[%s2 + $0x8] sm:$0x7]
  %v16 = vld [vmem:[%s0] sm:$0xff]
  %v17 = vld [vmem:[%s0 + $0x8] sm:$0xff]
  %v18 = vld [vmem:[%s0 + $0x10] sm:$0xff]
  %v19 = vld [vmem:[%s0 + $0x18] sm:$0xff]
  %v20 = vld [vmem:[%s1] sm:$0xff]
  %v21 = vld [vmem:[%s1 + $0x8] sm:$0xff]
  %v22 = vld [vmem:[%s1 + $0x10] sm:$0xff]
  %v23 = vld [vmem:[%s1 + $0x18] sm:$0xff]
  %v24 = vld [vmem:[%s1 + $0x20] sm:$0xff]
  %v25 = vld [vmem:[%s1 + $0x28] sm:$0xff]
  %v26 = vld [vmem:[%s1 + $0x30] sm:$0xff]
  %v27 = vld [vmem:[%s1 + $0x38] sm:$0xff]
  %v28 = vlaneseq
  %v29 = vshrl.u32 %v28, 7
  %v30 = vsub.s32 0, %v29
  %v31 = vrot.slane %v14, %v30
  %vm32 = vcmask 523264
  %v34 = vsel %vm32, %v16, 0
  %v37 = vsel %vm32, %v17, 0
  %v40 = vsel %vm32, %v18, 0
  %v43 = vsel %vm32, %v19, 0
  %45 = vmatprep.subr.mxu0 0.0
  %46 = vmatpush1.msra.mxu0 %v20
  %47 = vmatprep.subr.mxu0 0.0
  %48 = vmatpush1.msra.mxu0 %v21
  %49 = vmatprep.subr.mxu0 0.0
  %50 = vmatpush1.msra.mxu0 %v22
  %51 = vmatprep.subr.mxu0 0.0
  %52 = vmatpush1.msra.mxu0 %v23
  %53 = vmatprep.subr.mxu0 0.0
  %54 = vmatpush1.msra.mxu0 %v24
  %55 = vmatprep.subr.mxu0 0.0
  %56 = vmatpush1.msra.mxu0 %v25
  %57 = vmatprep.subr.mxu0 0.0
  %58 = vmatpush1.msra.mxu0 %v26
  %59 = vmatprep.subr.mxu0 0.0
  %60 = vmatpush1.msra.mxu0 %v27
  %61 = vmatprep.subr.mxu0 0.0
  %62 = vmatpush1.msra.mxu0 0.0
  %63 = vmatprep.subr.mxu0 0.0
  %64 = vmatpush1.msra.mxu0 0.0
  %65 = vmatprep.subr.mxu0 0.0
  %66 = vmatpush1.msra.mxu0 0.0
  %67 = vmatprep.subr.mxu0 0.0
  %68 = vmatpush1.msra.mxu0 0.0
  %69 = vmatprep.subr.mxu0 0.0
  %70 = vmatpush1.msra.mxu0 0.0
  %71 = vmatprep.subr.mxu0 0.0
  %72 = vmatpush1.msra.mxu0 0.0
  %73 = vmatprep.subr.mxu0 0.0
  %74 = vmatpush1.msra.mxu0 0.0
  %75 = vmatprep.subr.mxu0 0.0
  %76 = vmatpush1.msra.mxu0 0.0
  %77 = vmatprep.subr.mxu0 0.0
  %78 = vmatpush1.msra.mxu0 0.0
  %79 = vmatprep.subr.mxu0 0.0
  %80 = vmatpush1.msra.mxu0 0.0
  %81 = vmatprep.subr.mxu0 0.0
  %82 = vmatpush1.msra.mxu0 0.0
  %83 = vmatprep.subr.mxu0 0.0
  %84 = vmatpush1.msra.mxu0 0.0
  %85 = vmatprep.subr.mxu0 0.0
  %86 = vmatpush1.msra.mxu0 0.0
  %87 = vmatprep.subr.mxu0 0.0
  %88 = vmatpush1.msra.mxu0 0.0
  %89 = vmatprep.subr.mxu0 0.0
  %90 = vmatpush1.msra.mxu0 0.0
  %91 = vmatprep.subr.mxu0 0.0
  %92 = vmatpush1.msra.mxu0 0.0
  %93 = vmatprep.subr.mxu0 0.0
  %94 = vmatpush1.msra.mxu0 0.0
  %95 = vmatprep.subr.mxu0 0.0
  %96 = vmatpush1.msra.mxu0 0.0
  %97 = vmatprep.subr.mxu0 0.0
  %98 = vmatpush1.msra.mxu0 0.0
  %99 = vmatprep.subr.mxu0 0.0
  %100 = vmatpush1.msra.mxu0 0.0
  %101 = vmatprep.subr.mxu0 0.0
  %102 = vmatpush1.msra.mxu0 0.0
  %103 = vmatprep.subr.mxu0 0.0
  %104 = vmatpush1.msra.mxu0 0.0
  %105 = vmatprep.subr.mxu0 0.0
  %106 = vmatpush1.msra.mxu0 0.0
  %107 = vmatprep.subr.mxu0 0.0
  %108 = vmatpush1.msra.mxu0 0.0
  %109 = vmatprep.mubr.f32.mxu0 0.0
  %110 = vmatmul.mubr.f32.gmra.mrb[0].mxu0 %v34
  %v111 = vpop.f32.mrb[0].mxu0
  %v112 = vadd.f32 %v31, %v111
  %v113 = vpop.f32.mrb[0].mxu0
  %114 = vmatprep.mubr.f32.mxu0 0.0
  %115 = vmatmul.mubr.f32.gmra.mrb[0].mxu0 %v37
  %v116 = vpop.f32.mrb[0].mxu0
  %v117 = vadd.f32 %v31, %v116
  %v118 = vpop.f32.mrb[0].mxu0
  %119 = vmatprep.mubr.f32.mxu0 0.0
  %120 = vmatmul.mubr.f32.gmra.mrb[0].mxu0 %v40
  %v121 = vpop.f32.mrb[0].mxu0
  %v122 = vadd.f32 %v31, %v121
  %v123 = vpop.f32.mrb[0].mxu0
  %124 = vmatprep.mubr.f32.mxu0 0.0
  %125 = vmatmul.mubr.f32.gmra.mrb[0].mxu0 %v43
  %v126 = vpop.f32.mrb[0].mxu0
  %v127 = vadd.f32 %v31, %v126
  %v128 = vpop.f32.mrb[0].mxu0
  %129 = vdwg.mxu0
  %v130 = vlaneseq
  %v131 = vshrl.u32 %v130, 7
  %v132 = vadd.s32 %v131, 8
  %v133 = vadd.s32 %v131, 16
  %v134 = vadd.s32 %v131, 24
  %vm135 = vcmp.lt.s32.totalorder %v131, 0
  %v136 = vsub.s32 0, %v131
  %v137 = vsel %vm135, %v136, %v131
  %v138 = vshrl.u32 %v137, 4
  %v139 = vand.u32 %v137, 15
  %v140 = vsub.s32 0, %v139
  %v141 = vsel %vm135, %v140, %v139
  %vm142 = vcmp.lt.s32.totalorder %v132, 0
  %v143 = vsub.s32 0, %v132
  %v144 = vsel %vm142, %v143, %v132
  %v145 = vshrl.u32 %v144, 4
  %v146 = vand.u32 %v144, 15
  %v147 = vsub.s32 0, %v146
  %v148 = vsel %vm142, %v147, %v146
  %vm149 = vcmp.lt.s32.totalorder %v133, 0
  %v150 = vsub.s32 0, %v133
  %v151 = vsel %vm149, %v150, %v133
  %v152 = vshrl.u32 %v151, 4
  %v153 = vand.u32 %v151, 15
  %v154 = vsub.s32 0, %v153
  %v155 = vsel %vm149, %v154, %v153
  %vm156 = vcmp.lt.s32.totalorder %v134, 0
  %v157 = vsub.s32 0, %v134
  %v158 = vsel %vm156, %v157, %v134
  %v159 = vshrl.u32 %v158, 4
  %v160 = vand.u32 %v158, 15
  %v161 = vsub.s32 0, %v160
  %v162 = vsel %vm156, %v161, %v160
  %vm163 = vcmp.ne.s32.totalorder %v141, 0
  %vm164 = vcmp.ne.s32.totalorder %v148, 0
  %vm165 = vcmp.ne.s32.totalorder %v155, 0
  %vm166 = vcmp.ne.s32.totalorder %v162, 0
  %vm167 = vcmp.lt.s32.totalorder %v141, 0
  %vm168 = vcmp.lt.s32.totalorder %v148, 0
  %vm169 = vcmp.lt.s32.totalorder %v155, 0
  %vm170 = vcmp.lt.s32.totalorder %v162, 0
  %vm171 = vmand %vm167, %vm163
  %vm172 = vmand %vm168, %vm164
  %vm173 = vmand %vm169, %vm165
  %vm174 = vmand %vm170, %vm166
  %v175 = vadd.s32 %v141, 16
  %v176 = vadd.s32 %v148, 16
  %v177 = vadd.s32 %v155, 16
  %v178 = vadd.s32 %v162, 16
  %v179 = vsel %vm171, %v175, %v141
  %v180 = vsel %vm172, %v176, %v148
  %v181 = vsel %vm173, %v177, %v155
  %v182 = vsel %vm174, %v178, %v162
  %vm183 = vcmp.ge.s32.totalorder %v179, 1
  %vm184 = vcmp.ge.s32.totalorder %v180, 1
  %vm185 = vcmp.ge.s32.totalorder %v181, 1
  %vm186 = vcmp.ge.s32.totalorder %v182, 1
  %vm187 = vcmp.le.s32.totalorder %v179, 14
  %vm188 = vcmp.le.s32.totalorder %v180, 14
  %vm189 = vcmp.le.s32.totalorder %v181, 14
  %vm190 = vcmp.le.s32.totalorder %v182, 14
  %v191 = vlaneseq
  %v192 = vshrl.u32 %v191, 7
  %v193 = vsub.s32 5, %v192
  %v194 = vrot.slane %v14, %v193
  %v195 = vmul.f32 %v112, %v194
  %v196 = vmul.f32 %v117, %v194
  %v197 = vmul.f32 %v122, %v194
  %v198 = vmul.f32 %v127, %v194
  %v199 = vlaneseq
  %v200 = vshrl.u32 %v199, 7
  %v201 = vsub.s32 2, %v200
  %v202 = vrot.slane %v15, %v201
  %v203 = vadd.f32 %v202, %v195
  %v204 = vadd.f32 %v202, %v196
  %v205 = vadd.f32 %v202, %v197
  %v206 = vadd.f32 %v202, %v198
  %v207 = vrot.slane %v112, 7
  %v208 = vrot.slane %v117, 7
  %v209 = vrot.slane %v122, 7
  %v210 = vrot.slane %v127, 7
  %vm211 = vcmp.lt.s32.totalorder %v131, 1
  %v212 = vsel %vm211, %v209, %v210
  %v213 = vsel %vm211, %v208, %v209
  %v214 = vsel %vm211, %v207, %v208
  %v215 = vsel %vm211, %v210, %v207
  %v216 = vsel %vm183, 1, 0
  %v217 = vsel %vm184, 1, 0
  %v218 = vsel %vm185, 1, 0
  %v219 = vsel %vm186, 1, 0
  %vm220 = vcmp.eq.s32.totalorder %v216, 1
  %vm221 = vcmp.eq.s32.totalorder %v217, 1
  %vm222 = vcmp.eq.s32.totalorder %v218, 1
  %vm223 = vcmp.eq.s32.totalorder %v219, 1
  %v224 = vsel %vm220, %v215, 0.0
  %v225 = vsel %vm221, %v214, 0.0
  %v226 = vsel %vm222, %v213, 0.0
  %v227 = vsel %vm223, %v212, 0.0
  %228 = vrot.lane.b32.xlu0 %v224, 8
  %v229 = vpop.permute.xlu0 %228
  %230 = vrot.lane.b32.xlu0 %v225, 8
  %v231 = vpop.permute.xlu0 %230
  %232 = vrot.lane.b32.xlu0 %v226, 8
  %v233 = vpop.permute.xlu0 %232
  %234 = vrot.lane.b32.xlu0 %v227, 8
  %v235 = vpop.permute.xlu0 %234
  %v236 = vlaneseq
  %v237 = vshrl.u32 %v236, 7
  %v238 = vsub.s32 1, %v237
  %v239 = vrot.slane %v14, %v238
  %v240 = vmul.f32 %v229, %v239
  %v241 = vmul.f32 %v231, %v239
  %v242 = vmul.f32 %v233, %v239
  %v243 = vmul.f32 %v235, %v239
  %v244 = vadd.f32 %v203, %v240
  %v245 = vadd.f32 %v204, %v241
  %v246 = vadd.f32 %v205, %v242
  %v247 = vadd.f32 %v206, %v243
  %v248 = vlaneseq
  %v249 = vshrl.u32 %v248, 7
  %v250 = vsub.s32 2, %v249
  %v251 = vrot.slane %v14, %v250
  %v252 = vmul.f32 %v224, %v251
  %v253 = vmul.f32 %v225, %v251
  %v254 = vmul.f32 %v226, %v251
  %v255 = vmul.f32 %v227, %v251
  %v256 = vadd.f32 %v244, %v252
  %v257 = vadd.f32 %v245, %v253
  %v258 = vadd.f32 %v246, %v254
  %v259 = vadd.f32 %v247, %v255
  %260 = vrot.lane.b32.xlu0 %v224, 120
  %v261 = vpop.permute.xlu0 %260
  %262 = vrot.lane.b32.xlu0 %v225, 120
  %v263 = vpop.permute.xlu0 %262
  %264 = vrot.lane.b32.xlu0 %v226, 120
  %v265 = vpop.permute.xlu0 %264
  %266 = vrot.lane.b32.xlu0 %v227, 120
  %v267 = vpop.permute.xlu0 %266
  %v268 = vlaneseq
  %v269 = vshrl.u32 %v268, 7
  %v270 = vsub.s32 3, %v269
  %v271 = vrot.slane %v14, %v270
  %v272 = vmul.f32 %v261, %v271
  %v273 = vmul.f32 %v263, %v271
  %v274 = vmul.f32 %v265, %v271
  %v275 = vmul.f32 %v267, %v271
  %v276 = vadd.f32 %v256, %v272
  %v277 = vadd.f32 %v257, %v273
  %v278 = vadd.f32 %v258, %v274
  %v279 = vadd.f32 %v259, %v275
  %280 = vrot.lane.b32.xlu0 %v112, 8
  %v281 = vpop.permute.xlu0 %280
  %282 = vrot.lane.b32.xlu0 %v117, 8
  %v283 = vpop.permute.xlu0 %282
  %284 = vrot.lane.b32.xlu0 %v122, 8
  %v285 = vpop.permute.xlu0 %284
  %286 = vrot.lane.b32.xlu0 %v127, 8
  %v287 = vpop.permute.xlu0 %286
  %v288 = vlaneseq
  %v289 = vshrl.u32 %v288, 7
  %v290 = vsub.s32 4, %v289
  %v291 = vrot.slane %v14, %v290
  %v292 = vmul.f32 %v281, %v291
  %v293 = vmul.f32 %v283, %v291
  %v294 = vmul.f32 %v285, %v291
  %v295 = vmul.f32 %v287, %v291
  %v296 = vadd.f32 %v276, %v292
  %v297 = vadd.f32 %v277, %v293
  %v298 = vadd.f32 %v278, %v294
  %v299 = vadd.f32 %v279, %v295
  %300 = vrot.lane.b32.xlu0 %v112, 120
  %v301 = vpop.permute.xlu0 %300
  %302 = vrot.lane.b32.xlu0 %v117, 120
  %v303 = vpop.permute.xlu0 %302
  %304 = vrot.lane.b32.xlu0 %v122, 120
  %v305 = vpop.permute.xlu0 %304
  %306 = vrot.lane.b32.xlu0 %v127, 120
  %v307 = vpop.permute.xlu0 %306
  %v308 = vlaneseq
  %v309 = vshrl.u32 %v308, 7
  %v310 = vsub.s32 6, %v309
  %v311 = vrot.slane %v14, %v310
  %v312 = vmul.f32 %v301, %v311
  %v313 = vmul.f32 %v303, %v311
  %v314 = vmul.f32 %v305, %v311
  %v315 = vmul.f32 %v307, %v311
  %v316 = vadd.f32 %v296, %v312
  %v317 = vadd.f32 %v297, %v313
  %v318 = vadd.f32 %v298, %v314
  %v319 = vadd.f32 %v299, %v315
  %v320 = vrot.slane %v112, 1
  %v321 = vrot.slane %v117, 1
  %v322 = vrot.slane %v122, 1
  %v323 = vrot.slane %v127, 1
  %vm324 = vcmp.lt.s32.totalorder %v131, 7
  %v325 = vsel %vm324, %v322, %v323
  %v326 = vsel %vm324, %v321, %v322
  %v327 = vsel %vm324, %v320, %v321
  %v328 = vsel %vm324, %v323, %v320
  %v329 = vsel %vm187, 1, 0
  %v330 = vsel %vm188, 1, 0
  %v331 = vsel %vm189, 1, 0
  %v332 = vsel %vm190, 1, 0
  %vm333 = vcmp.eq.s32.totalorder %v329, 1
  %vm334 = vcmp.eq.s32.totalorder %v330, 1
  %vm335 = vcmp.eq.s32.totalorder %v331, 1
  %vm336 = vcmp.eq.s32.totalorder %v332, 1
  %v337 = vsel %vm333, %v327, 0.0
  %v338 = vsel %vm334, %v326, 0.0
  %v339 = vsel %vm335, %v325, 0.0
  %v340 = vsel %vm336, %v328, 0.0
  %341 = vrot.lane.b32.xlu0 %v337, 8
  %v342 = vpop.permute.xlu0 %341
  %343 = vrot.lane.b32.xlu0 %v338, 8
  %v344 = vpop.permute.xlu0 %343
  %345 = vrot.lane.b32.xlu0 %v339, 8
  %v346 = vpop.permute.xlu0 %345
  %347 = vrot.lane.b32.xlu0 %v340, 8
  %v348 = vpop.permute.xlu0 %347
  %v349 = vlaneseq
  %v350 = vshrl.u32 %v349, 7
  %v351 = vsub.s32 7, %v350
  %v352 = vrot.slane %v14, %v351
  %v353 = vmul.f32 %v342, %v352
  %v354 = vmul.f32 %v344, %v352
  %v355 = vmul.f32 %v346, %v352
  %v356 = vmul.f32 %v348, %v352
  %v357 = vadd.f32 %v316, %v353
  %v358 = vadd.f32 %v317, %v354
  %v359 = vadd.f32 %v318, %v355
  %v360 = vadd.f32 %v319, %v356
  %v361 = vlaneseq
  %v362 = vshrl.u32 %v361, 7
  %v363 = vsub.s32 0, %v362
  %v364 = vrot.slane %v15, %v363
  %v365 = vmul.f32 %v337, %v364
  %v366 = vmul.f32 %v338, %v364
  %v367 = vmul.f32 %v339, %v364
  %v368 = vmul.f32 %v340, %v364
  %v369 = vadd.f32 %v357, %v365
  %v370 = vadd.f32 %v358, %v366
  %v371 = vadd.f32 %v359, %v367
  %v372 = vadd.f32 %v360, %v368
  %373 = vrot.lane.b32.xlu0 %v337, 120
  %v374 = vpop.permute.xlu0 %373
  %375 = vrot.lane.b32.xlu0 %v338, 120
  %v376 = vpop.permute.xlu0 %375
  %377 = vrot.lane.b32.xlu0 %v339, 120
  %v378 = vpop.permute.xlu0 %377
  %379 = vrot.lane.b32.xlu0 %v340, 120
  %v380 = vpop.permute.xlu0 %379
  %v381 = vlaneseq
  %v382 = vshrl.u32 %v381, 7
  %v383 = vsub.s32 1, %v382
  %v384 = vrot.slane %v15, %v383
  %v385 = vmul.f32 %v374, %v384
  %v386 = vmul.f32 %v376, %v384
  %v387 = vmul.f32 %v378, %v384
  %v388 = vmul.f32 %v380, %v384
  %v389 = vadd.f32 %v369, %v385
  %v390 = vadd.f32 %v370, %v386
  %v391 = vadd.f32 %v371, %v387
  %v392 = vadd.f32 %v372, %v388
  %393 = vst [vmem:[%s3] sm:$0xff] %v389
  %394 = vst [vmem:[%s3 + $0x8] sm:$0xff] %v390
  %395 = vst [vmem:[%s3 + $0x10] sm:$0xff] %v391
  %396 = vst [vmem:[%s3 + $0x18] sm:$0xff] %v392
  // Predicated region
  $region14: #{idsc_pallas.1} parent=0 // pred_check
    _
  $region15: #{idsc_pallas.1} parent=0 // pred_check_branch
    %398 = sbr.rel (0) target = $region17
  $region16: #{idsc_pallas.1} parent=0 // pred_region
    _
  $region17: #{idsc_pallas.1} parent=0 // pred_fallthru
    _
  // Predicated region
  $region18: #{idsc_pallas.1} parent=0 // pred_check
    _
  $region19: #{idsc_pallas.1} parent=0 // pred_check_branch
    %400 = sbr.rel (0) target = $region21
  $region20: #{idsc_pallas.1} parent=0 // pred_region
    _
  $region21: #{idsc_pallas.1} parent=0 // pred_fallthru
    _

</llo_original>
